<compile_context>
chip_gen: v7x
topology: tpu7x:2x2x1
jax: 0.10.0
libtpu: 0.0.40
codegen_flags: <defaults>
</compile_context>

<pallas_src>
import math

import jax
import jax.numpy as jnp
from jax.experimental import pallas as pl
from jax.experimental.pallas import tpu as pltpu

DROPOUT_P = 0.5
BN_EPS = 1e-5
ACT_DTYPE = jnp.bfloat16          # inter-layer activations / MXU operands
FC_PAD = 128                      # pad FC output lanes to 128 (lane-dense stores)
LANE = 128


def _round_up(x, n):
    return (x + n - 1) // n * n


def _cpad(c):
    # storage channel width: pad the 64-channel stages to a full 128-lane register
    return max(c, LANE)


def _vmem_budget_bytes():
    cap = 64 * 1024 * 1024                       # conservative default (v7x per-TC VMEM)
    try:
        info = pltpu.get_tpu_info()
        cap = int(getattr(info, "vmem_capacity_bytes", cap))
    except Exception:
        pass
    return max(32 * 1024 * 1024, (cap * 3) // 4)


VMEM_BUDGET = _vmem_budget_bytes()


def _mosaic_params(dims):
    return pltpu.CompilerParams(dimension_semantics=dims,
                                vmem_limit_bytes=VMEM_BUDGET)


# ----------------------------- Pallas kernels -----------------------------

def _make_mm_kernel(relu):
    """o = [relu]( dot_bf16(patches, w) * bn_scale + bn_bias ), f32 epilogue."""
    def kernel(p_ref, w_ref, s_ref, b_ref, o_ref):
        y = jnp.dot(p_ref[...], w_ref[...], preferred_element_type=jnp.float32)
        y = y * s_ref[...] + b_ref[...]
        if relu:
            y = jnp.maximum(y, 0.0)
        o_ref[...] = y.astype(o_ref.dtype)
    return kernel


def _make_fused3x3_kernel(wp, relu, residual):
    """Stride-1 3x3 conv: 9 shifted contiguous row-slices of the flattened padded image
    -> MXU, f32 accumulate, folded BN [+ residual] [+ ReLU] epilogue. No im2col in HBM."""
    def kernel(xp_ref, w_ref, s_ref, b_ref, *rest):
        if residual:
            r_ref, o_ref = rest
        else:
            (o_ref,) = rest
        mo = o_ref.shape[1]
        acc = None
        for t in range(9):
            di, dj = divmod(t, 3)
            lhs = xp_ref[0, pl.ds(di * wp + dj, mo), :]
            y = jnp.dot(lhs, w_ref[t], preferred_element_type=jnp.float32)
            acc = y if acc is None else acc + y
        acc = acc * s_ref[...] + b_ref[...]
        if residual:
            acc = acc + r_ref[0].astype(jnp.float32)
        if relu:
            acc = jnp.maximum(acc, 0.0)
        o_ref[0] = acc.astype(o_ref.dtype)
    return kernel


def _make_maxpool_kernel(oh, ow):
    """3x3/2 max pool over even/odd column planes; leading-dim reshapes + VPU maxima."""
    def kernel(xe_ref, xo_ref, o_ref):
        hp = xe_ref.shape[1]
        c = o_ref.shape[-1]
        xe = xe_ref[0].reshape(hp // 2, 2, ow + 1, c)
        xo = xo_ref[0].reshape(hp // 2, 2, ow + 1, c)
        he = jnp.maximum(jnp.maximum(xe[0:oh, 0], xe[0:oh, 1]), xe[1:oh + 1, 0])
        ho = jnp.maximum(jnp.maximum(xo[0:oh, 0], xo[0:oh, 1]), xo[1:oh + 1, 0])
        r = jnp.maximum(jnp.maximum(he[:, 0:ow], ho[:, 0:ow]), he[:, 1:ow + 1])
        o_ref[0] = r
    return kernel


def _avgpool_kernel(x_ref, o_ref):
    # x_ref: (N, H*W, C) -> global average pool, f32 accumulate
    o_ref[...] = jnp.mean(x_ref[...].astype(jnp.float32), axis=1)


def _fc_kernel(x_ref, m_ref, w_ref, b_ref, o_ref):
    # MC-dropout (pre-scaled keep mask, always active) + Linear, lane-padded output.
    xd = x_ref[...] * m_ref[...]
    y = jnp.dot(xd, w_ref[...], preferred_element_type=jnp.float32)
    o_ref[...] = y + b_ref[...]


# ----------------------------- wrappers (glue) -----------------------------

def _pick_tm(m, k, n_out, budget):
    """Largest M tile whose double-buffered working set fits the VMEM budget, preferring
    >=2 tiles so both TensorCores of a dual-TC chip get work on the parallel M axis."""
    m8 = max(8, _round_up(m, 8))
    cands = [c for c in (1024, 512, 256, 128, 64, 32, 16, 8) if c <= m8] or [8]

    def est(tm):
        tiles = 2 * 2 * (tm * k + k * n_out + tm * n_out)   # double-buffered bf16 blocks
        return int(1.25 * (tiles + 4 * tm * n_out))         # + f32 epilogue temps

    fitting = [tm for tm in cands if est(tm) <= budget] or [cands[-1]]
    for tm in fitting:
        if _round_up(m, tm) // tm >= 2:
            return tm
    return fitting[0]


def _im2col(x, kh, kw, stride, pad):
    # Only used for stride-2 convs (conv1 7x7, layer-transition 3x3) and 1x1 downsamples.
    # TODO(synk): fold these strided windows into the kernel too to drop the remaining
    # im2col HBM traffic (2.25x for the 3x3/2 convs, ~12x for the 3-channel conv1).
    n, h, w, c = x.shape
    oh = (h + 2 * pad - kh) // stride + 1
    ow = (w + 2 * pad - kw) // stride + 1
    xp = jnp.pad(x, ((0, 0), (pad, pad), (pad, pad), (0, 0)))
    cols = []
    for i in range(kh):
        for j in range(kw):
            cols.append(xp[:, i:i + stride * (oh - 1) + 1:stride,
                           j:j + stride * (ow - 1) + 1:stride, :])
    patches = jnp.stack(cols, axis=3)                  # (N, OH, OW, KK, C)
    return patches.reshape(n * oh * ow, kh * kw * c), oh, ow


def conv_bn_im2col(x, wmat, bn_s, bn_b, kh, kw, stride, pad, relu=True):
    """Conv2d(bias=False) + folded eval-mode BN [+ ReLU] as a weight-resident matmul."""
    n = x.shape[0]
    k, cout = wmat.shape
    patches, oh, ow = _im2col(x, kh, kw, stride, pad)
    m = patches.shape[0]
    tm = _pick_tm(m, k, cout, VMEM_BUDGET)
    m_pad = _round_up(m, tm)
    if m_pad != m:
        patches = jnp.pad(patches, ((0, m_pad - m), (0, 0)))
    out = pl.pallas_call(
        _make_mm_kernel(relu),
        grid=(m_pad // tm,),
        in_specs=[
            pl.BlockSpec((tm, k), lambda i: (i, 0)),
            pl.BlockSpec((k, cout), lambda i: (0, 0)),   # weight fetched once, resident
            pl.BlockSpec((1, cout), lambda i: (0, 0)),
            pl.BlockSpec((1, cout), lambda i: (0, 0)),
        ],
        out_specs=pl.BlockSpec((tm, cout), lambda i: (i, 0)),
        out_shape=jax.ShapeDtypeStruct((m_pad, cout), ACT_DTYPE),
        compiler_params=_mosaic_params(("parallel",)),
    )(patches, wmat, bn_s, bn_b)
    return out[:m].reshape(n, oh, ow, cout)


def conv3x3_s1_fused(x, w9, bn_s, bn_b, relu=True, residual=None):
    """Fused stride-1 3x3 conv + BN [+ residual] [+ ReLU]; no im2col materialization."""
    n, h, w, cin = x.shape
    cout = w9.shape[-1]
    oh, ow = h, w
    wp = w + 2
    mo = oh * wp
    # one extra zero row at the bottom keeps the junk-column tap reads inside the block
    xp = jnp.pad(x, ((0, 0), (1, 2), (1, 1), (0, 0))).reshape(n, (h + 3) * wp, cin)
    args = [xp, w9, bn_s, bn_b]
    in_specs = [
        pl.BlockSpec((1, (h + 3) * wp, cin), lambda i: (i, 0, 0)),
        pl.BlockSpec((9, cin, cout), lambda i: (0, 0, 0)),   # weights resident
        pl.BlockSpec((1, cout), lambda i: (0, 0)),
        pl.BlockSpec((1, cout), lambda i: (0, 0)),
    ]
    if residual is not None:
        rfl = jnp.pad(residual, ((0, 0), (0, 0), (0, 2), (0, 0))).reshape(n, mo, cout)
        in_specs.append(pl.BlockSpec((1, mo, cout), lambda i: (i, 0, 0)))
        args.append(rfl)
    out = pl.pallas_call(
        _make_fused3x3_kernel(wp, relu, residual is not None),
        grid=(n,),
        in_specs=in_specs,
        out_specs=pl.BlockSpec((1, mo, cout), lambda i: (i, 0, 0)),
        out_shape=jax.ShapeDtypeStruct((n, mo, cout), ACT_DTYPE),
        compiler_params=_mosaic_params(("parallel",)),
    )(*args)
    # crop the 2 junk columns produced by the flat formulation
    return out.reshape(n, oh, wp, cout)[:, :, :ow, :]


def maxpool_3x3_s2(x):
    n, h, w, c = x.shape
    assert h % 2 == 0 and w % 2 == 0, "maxpool kernel assumes even spatial dims"
    oh, ow = h // 2, w // 2
    xp = jnp.pad(x, ((0, 0), (1, 1), (1, 1), (0, 0)), constant_values=-jnp.inf)
    xe = xp[:, :, 0::2, :]                              # even padded columns (N,H+2,OW+1,C)
    xo = xp[:, :, 1::2, :]                              # odd padded columns
    return pl.pallas_call(
        _make_maxpool_kernel(oh, ow),
        grid=(n,),
        in_specs=[
            pl.BlockSpec((1, h + 2, ow + 1, c), lambda i: (i, 0, 0, 0)),
            pl.BlockSpec((1, h + 2, ow + 1, c), lambda i: (i, 0, 0, 0)),
        ],
        out_specs=pl.BlockSpec((1, oh, ow, c), lambda i: (i, 0, 0, 0)),
        out_shape=jax.ShapeDtypeStruct((n, oh, ow, c), x.dtype),
        compiler_params=_mosaic_params(("parallel",)),
    )(xe, xo)


def global_avgpool(x):
    n, h, w, c = x.shape
    return pl.pallas_call(
        _avgpool_kernel,
        out_shape=jax.ShapeDtypeStruct((n, c), jnp.float32),
    )(x.reshape(n, h * w, c))


def fc_dropout(feat, mask, w_pad, b_pad):
    n = feat.shape[0]
    cpad = w_pad.shape[1]
    return pl.pallas_call(
        _fc_kernel,
        out_shape=jax.ShapeDtypeStruct((n, cpad), jnp.float32),
    )(feat, mask, w_pad, b_pad)


# ----------------------------- parameters -----------------------------

def _conv_w(key, cout, cin, kh, kw, cin_pad=None, cout_pad=None):
    cin_pad = cin if cin_pad is None else cin_pad
    cout_pad = cout if cout_pad is None else cout_pad
    std = 1.0 / math.sqrt(cin * kh * kw)
    w = std * jax.random.normal(key, (cout, cin, kh, kw), jnp.float32)
    w = jnp.transpose(w, (2, 3, 1, 0))                 # (KH, KW, Cin, Cout)
    w = jnp.pad(w, ((0, 0), (0, 0), (0, cin_pad - cin), (0, cout_pad - cout)))
    return w.reshape(kh * kw, cin_pad, cout_pad).astype(ACT_DTYPE)


def _bn(key, c, c_pad=None):
    c_pad = c if c_pad is None else c_pad
    k1, k2, k3, k4 = jax.random.split(key, 4)
    gamma = 1.0 + 0.1 * jax.random.normal(k1, (c,), jnp.float32)
    beta = 0.1 * jax.random.normal(k2, (c,), jnp.float32)
    mean = 0.1 * jax.random.normal(k3, (c,), jnp.float32)
    var = 0.5 + jax.random.uniform(k4, (c,), jnp.float32)
    scale = gamma / jnp.sqrt(var + BN_EPS)             # eval-mode BN folded
    bias = beta - mean * scale
    scale = jnp.pad(scale, (0, c_pad - c))
    bias = jnp.pad(bias, (0, c_pad - c))
    return scale.reshape(1, c_pad), bias.reshape(1, c_pad)


def init_params(key, num_classes=10):
    keys = iter(jax.random.split(key, 128))
    p = {'num_classes': num_classes}
    p['conv1_w'] = _conv_w(next(keys), 64, 3, 7, 7, cin_pad=3, cout_pad=_cpad(64))
    p['bn1_s'], p['bn1_b'] = _bn(next(keys), 64, _cpad(64))
    cfg = [('layer1', 64, 64, 1), ('layer2', 64, 128, 2),
           ('layer3', 128, 256, 2), ('layer4', 256, 512, 2)]
    for name, cin, cout, stride in cfg:
        blocks = []
        for b in range(2):                              # resnet18: 2 BasicBlocks / layer
            s = stride if b == 0 else 1
            in_c = cin if b == 0 else cout
            bp = {'stride': s}
            bp['conv1_w'] = _conv_w(next(keys), cout, in_c, 3, 3,
                                    cin_pad=_cpad(in_c), cout_pad=_cpad(cout))
            bp['bn1_s'], bp['bn1_b'] = _bn(next(keys), cout, _cpad(cout))
            bp['conv2_w'] = _conv_w(next(keys), cout, cout, 3, 3,
                                    cin_pad=_cpad(cout), cout_pad=_cpad(cout))
            bp['bn2_s'], bp['bn2_b'] = _bn(next(keys), cout, _cpad(cout))
            if s != 1 or in_c != cout:
                bp['down_w'] = _conv_w(next(keys), cout, in_c, 1, 1,
                                       cin_pad=_cpad(in_c), cout_pad=_cpad(cout))
                bp['dbn_s'], bp['dbn_b'] = _bn(next(keys), cout, _cpad(cout))
            blocks.append(bp)
        p[name] = blocks
    wfc = (1.0 / math.sqrt(512)) * jax.random.normal(
        next(keys), (num_classes, 512), jnp.float32)
    bfc = 0.01 * jax.random.normal(next(keys), (num_classes,), jnp.float32)
    # pad the head to 128 output lanes (unmasked stores); bf16 weights feed the MXU natively
    p['fc_w_pad'] = jnp.zeros((512, FC_PAD), ACT_DTYPE).at[:, :num_classes].set(
        wfc.T.astype(ACT_DTYPE))
    p['fc_b_pad'] = jnp.zeros((1, FC_PAD), jnp.float32).at[0, :num_classes].set(bfc)
    return p


# ----------------------------- forward -----------------------------

def _basic_block(x, bp):
    identity = x
    s = bp['stride']
    if s == 1:
        out = conv3x3_s1_fused(x, bp['conv1_w'], bp['bn1_s'], bp['bn1_b'], relu=True)
    else:
        out = conv_bn_im2col(x, bp['conv1_w'].reshape(-1, bp['conv1_w'].shape[-1]),
                             bp['bn1_s'], bp['bn1_b'], 3, 3, s, 1, relu=True)
    if 'down_w' in bp:
        identity = conv_bn_im2col(x, bp['down_w'].reshape(-1, bp['down_w'].shape[-1]),
                                  bp['dbn_s'], bp['dbn_b'], 1, 1, s, 0, relu=False)
    # conv2 is always stride 1: fused conv + BN + residual + ReLU in one kernel
    return conv3x3_s1_fused(out, bp['conv2_w'], bp['bn2_s'], bp['bn2_b'],
                            relu=True, residual=identity)


def mc_resnet18_forward(x_nchw, params, seed=0):
    x = jnp.transpose(x_nchw.astype(jnp.float32), (0, 2, 3, 1)).astype(ACT_DTYPE)
    x = conv_bn_im2col(x, params['conv1_w'].reshape(-1, params['conv1_w'].shape[-1]),
                       params['bn1_s'], params['bn1_b'], 7, 7, 2, 3, relu=True)
    x = maxpool_3x3_s2(x)
    for layer in ('layer1', 'layer2', 'layer3', 'layer4'):
        for bp in params[layer]:
            x = _basic_block(x, bp)
    feat = global_avgpool(x).astype(ACT_DTYPE)                   # (N, 512)
    n, d = feat.shape
    keep = jax.random.bernoulli(jax.random.PRNGKey(seed), 1.0 - DROPOUT_P, (n, d))
    mask = (keep.astype(jnp.float32) / (1.0 - DROPOUT_P)).astype(ACT_DTYPE)
    # TODO(synk): batch T MC-dropout samples into a single (T*N, 512) x (512, 128) matmul.
    logits_pad = fc_dropout(feat, mask, params['fc_w_pad'], params['fc_b_pad'])
    return logits_pad[:, :params['num_classes']]                 # (N, num_classes)


if __name__ == "__main__":
    key = jax.random.PRNGKey(0)
    kx, kp = jax.random.split(key)
    x = jax.random.normal(kx, (2, 3, 32, 32), jnp.float32)       # NCHW, like PyTorch
    params = init_params(kp, num_classes=10)
    logits = mc_resnet18_forward(x, params, seed=0)
    jax.block_until_ready(logits)
    assert logits.shape == (2, 10) and bool(jnp.all(jnp.isfinite(logits)))
    print("KERNEL_OK")
</pallas_src>

<mosaic_0001>
module attributes {stable_mosaic.version = 11 : i64} {
  func.func @kernel(%arg0: i32, %arg1: memref<256x147xbf16, #tpu.memory_space<vmem>>, %arg2: memref<147x128xbf16, #tpu.memory_space<vmem>>, %arg3: memref<1x128xf32, #tpu.memory_space<vmem>>, %arg4: memref<1x128xf32, #tpu.memory_space<vmem>>, %arg5: memref<256x128xbf16, #tpu.memory_space<vmem>>) attributes {dimension_semantics = [#tpu.dimension_semantics<parallel>], iteration_bounds = array<i64: 2>, scalar_prefetch = 0 : i64, scratch_operands = 0 : i64, tpu.core_type = #tpu.core_type<tc>, window_params = [{transform_indices = @transform_0, window_bounds = array<i64: 256, 147>}, {pipeline_mode = #tpu.pipeline_mode<synchronous>, transform_indices = @transform_1, window_bounds = array<i64: 147, 128>}, {pipeline_mode = #tpu.pipeline_mode<synchronous>, transform_indices = @transform_2, window_bounds = array<i64: 1, 128>}, {pipeline_mode = #tpu.pipeline_mode<synchronous>, transform_indices = @transform_3, window_bounds = array<i64: 1, 128>}, {transform_indices = @transform_4, window_bounds = array<i64: 256, 128>}]} {
    %c0 = arith.constant 0 : index
    %c0_0 = arith.constant 0 : index
    %0 = vector.load %arg1[%c0, %c0_0] : memref<256x147xbf16, #tpu.memory_space<vmem>>, vector<256x147xbf16>
    %c0_1 = arith.constant 0 : index
    %c0_2 = arith.constant 0 : index
    %1 = vector.load %arg2[%c0_1, %c0_2] : memref<147x128xbf16, #tpu.memory_space<vmem>>, vector<147x128xbf16>
    %cst = arith.constant dense<0.000000e+00> : vector<256x128xf32>
    %2 = tpu.matmul %0, %1, %cst {dimension_numbers = #tpu.dot_dimension_numbers<[1], [0], [0], [1], [0, 0, 1, 1], [], []>} : vector<256x147xbf16>, vector<147x128xbf16>, vector<256x128xf32> -> vector<256x128xf32>
    %c0_3 = arith.constant 0 : index
    %c0_4 = arith.constant 0 : index
    %3 = vector.load %arg3[%c0_3, %c0_4] : memref<1x128xf32, #tpu.memory_space<vmem>>, vector<1x128xf32>
    %4 = vector.broadcast %3 : vector<1x128xf32> to vector<256x128xf32>
    %5 = arith.mulf %2, %4 : vector<256x128xf32>
    %c0_5 = arith.constant 0 : index
    %c0_6 = arith.constant 0 : index
    %6 = vector.load %arg4[%c0_5, %c0_6] : memref<1x128xf32, #tpu.memory_space<vmem>>, vector<1x128xf32>
    %7 = vector.broadcast %6 : vector<1x128xf32> to vector<256x128xf32>
    %8 = arith.addf %5, %7 : vector<256x128xf32>
    %cst_7 = arith.constant 0.000000e+00 : f32
    %9 = vector.broadcast %cst_7 : f32 to vector<256x128xf32>
    %10 = arith.maximumf %8, %9 : vector<256x128xf32>
    %11 = arith.truncf %10 : vector<256x128xf32> to vector<256x128xbf16>
    %c0_8 = arith.constant 0 : index
    %c0_9 = arith.constant 0 : index
    %12 = vector.load %arg5[%c0_8, %c0_9] : memref<256x128xbf16, #tpu.memory_space<vmem>>, vector<256x128xbf16>
    tpu.vector_store %arg5[%c0_8, %c0_9], %11 {strides = array<i32>} : memref<256x128xbf16, #tpu.memory_space<vmem>>, vector<256x128xbf16>,
    return
  }
  func.func @transform_0(%arg0: i32) -> (i32, i32) {
    %c0_i32 = arith.constant 0 : i32
    %c0_i32_0 = arith.constant 0 : i32
    return %arg0, %c0_i32 : i32, i32
  }
  func.func @transform_1(%arg0: i32) -> (i32, i32) {
    %c0_i32 = arith.constant 0 : i32
    %c0_i32_0 = arith.constant 0 : i32
    %c0_i32_1 = arith.constant 0 : i32
    return %c0_i32, %c0_i32_0 : i32, i32
  }
  func.func @transform_2(%arg0: i32) -> (i32, i32) {
    %c0_i32 = arith.constant 0 : i32
    %c0_i32_0 = arith.constant 0 : i32
    %c0_i32_1 = arith.constant 0 : i32
    return %c0_i32, %c0_i32_0 : i32, i32
  }
  func.func @transform_3(%arg0: i32) -> (i32, i32) {
    %c0_i32 = arith.constant 0 : i32
    %c0_i32_0 = arith.constant 0 : i32
    %c0_i32_1 = arith.constant 0 : i32
    return %c0_i32, %c0_i32_0 : i32, i32
  }
  func.func @transform_4(%arg0: i32) -> (i32, i32) {
    %c0_i32 = arith.constant 0 : i32
    %c0_i32_0 = arith.constant 0 : i32
    return %arg0, %c0_i32 : i32, i32
  }
}

</mosaic_0001>

<llo_original>
// kernel: tpu_custom_call.1
$region0: #{tpu_custom_call.1}
  #allocation0 [shape = 'u32[]', space=smem, size = 0x4, offset = 0x4, fixed_abs, tag = 'smem constant byte address 0x4 - core index']
  #allocation1 [shape = 'u32[144,128]{1,0:T(1,128)}', space=vmem, size = 0x12000, scoped, tag = 'internal scratch']
  %s0 = inlined_call_operand.vmem [shape: bf16[512,147], index: 0, kind: input, shape index: {}]
  %s1 = inlined_call_operand.vmem [shape: bf16[147,128], index: 1, kind: input, shape index: {}]
  %s2 = inlined_call_operand.vmem [shape: f32[1,128], index: 2, kind: input, shape index: {}]
  %s3 = inlined_call_operand.vmem [shape: f32[1,128], index: 3, kind: input, shape index: {}]
  %s4 = inlined_call_operand.hbm [shape: bf16[512,128], index: 4, kind: output, shape index: {}]
  %s5 = sld [smem:[#allocation0]]
  $region49: #{tpu_custom_call.1} parent=0
    _
  %s7 = ssub.s32 1, %s5
  %s8 = scalar_select 0, %s7, %s5
  $region1: #{tpu_custom_call.1} parent=0
    #allocation2 [shape = 'u8[131072]{0}', space=vmem, size = 0x20000, scoped, tag = 'output window, operand 0']
    #allocation3 [shape = 's32[2]{0}', space=sflag, size = 0x8, scoped, tag = 'scoped memory for tpu_custom_call.1']
    %9 = vsyncpa [#allocation3], 0
    %s10 = scalar_lea.sflag [#allocation3], 1
    %11 = vsyncpa %s10, 0
    loop: start=0, step=1, limit=4
    $region2: #{tpu_custom_call.1} parent=1 // loop_pre_header
      _
    $region3: #{tpu_custom_call.1} parent=1 // loop_header
      %s13 = sphi 0, %s17
      %p14 = scmp.ge.s32.totalorder %s13, 4
      %s23 = sphi 0, %s25
      %s26 = sphi 0, %s23
      %s27 = sphi 0, %s26
      %s43 = sphi 0, %s27
      %s47 = sphi 0, %s47
      %s49 = sphi 0, %s47
      %s50 = sphi 0, %s49
      %s64 = sphi 0, %s50
      %s68 = sphi 0, %s68
      %s70 = sphi 0, %s68
      %s71 = sphi 0, %s70
      %s85 = sphi 0, %s71
      %s89 = sphi 0, %s89
      %s91 = sphi 0, %s89
      %s92 = sphi 0, %s91
      %s106 = sphi 0, %s92
      %s112 = sphi 0, %s114
      %s115 = sphi 0, %s112
      %s116 = sphi 0, %s115
      %s132 = sphi 0, %s116
    $region4: #{tpu_custom_call.1} parent=1 // loop_header_branch
      %16 = sbr.rel (%p14) target = $region8
    $region5: #{tpu_custom_call.1} parent=1 // loop_body
      %s18 = ssub.s32 %s13, 1
      %s19 = ssub.s32 %s13, 2
      %s20 = sadd.s32 %s13, 1
      %s21 = ssub.s32 %s13, %s20
      %p22 = scmp.eq.s32.totalorder %s21, 0
      %s24 = sadd.s32 %s23, 1
      %s25 = scalar_select %p22, %s23, %s24
      %p28 = pneg %p22
      %p29 = scmp.eq.s32.totalorder %s13, 1
      %p30 = por %p28, %p29
      %p31 = scmp.ne.s32.totalorder %s23, %s26
      %p32 = scmp.eq.s32.totalorder %s13, 0
      %p33 = por %p31, %p32
      %p34 = scmp.ne.s32.totalorder %s23, %s26
      %p35 = scmp.eq.s32.totalorder %s18, 1
      %p36 = por %p34, %p35
      %p37 = scmp.ne.s32.totalorder %s26, %s27
      %p38 = scmp.eq.s32.totalorder %s18, 0
      %p39 = por %p37, %p38
      %p40 = scmp.ne.s32.totalorder %s26, %s27
      %p41 = scmp.eq.s32.totalorder %s19, 1
      %p42 = por %p40, %p41
      %p44 = scmp.ne.s32.totalorder %s27, %s43
      %p45 = scmp.eq.s32.totalorder %s19, 0
      %p46 = por %p44, %p45
      %s48 = sadd.s32 %s47, 1
      %p51 = scmp.eq.s32.totalorder %s13, 1
      %p52 = scmp.ne.s32.totalorder %s47, %s49
      %p53 = scmp.eq.s32.totalorder %s13, 0
      %p54 = por %p52, %p53
      %p55 = scmp.ne.s32.totalorder %s47, %s49
      %p56 = scmp.eq.s32.totalorder %s18, 1
      %p57 = por %p55, %p56
      %p58 = scmp.ne.s32.totalorder %s49, %s50
      %p59 = scmp.eq.s32.totalorder %s18, 0
      %p60 = por %p58, %p59
      %p61 = scmp.ne.s32.totalorder %s49, %s50
      %p62 = scmp.eq.s32.totalorder %s19, 1
      %p63 = por %p61, %p62
      %p65 = scmp.ne.s32.totalorder %s50, %s64
      %p66 = scmp.eq.s32.totalorder %s19, 0
      %p67 = por %p65, %p66
      %s69 = sadd.s32 %s68, 1
      %p72 = scmp.eq.s32.totalorder %s13, 1
      %p73 = scmp.ne.s32.totalorder %s68, %s70
      %p74 = scmp.eq.s32.totalorder %s13, 0
      %p75 = por %p73, %p74
      %p76 = scmp.ne.s32.totalorder %s68, %s70
      %p77 = scmp.eq.s32.totalorder %s18, 1
      %p78 = por %p76, %p77
      %p79 = scmp.ne.s32.totalorder %s70, %s71
      %p80 = scmp.eq.s32.totalorder %s18, 0
      %p81 = por %p79, %p80
      %p82 = scmp.ne.s32.totalorder %s70, %s71
      %p83 = scmp.eq.s32.totalorder %s19, 1
      %p84 = por %p82, %p83
      %p86 = scmp.ne.s32.totalorder %s71, %s85
      %p87 = scmp.eq.s32.totalorder %s19, 0
      %p88 = por %p86, %p87
      %s90 = sadd.s32 %s89, 1
      %p93 = scmp.eq.s32.totalorder %s13, 1
      %p94 = scmp.ne.s32.totalorder %s89, %s91
      %p95 = scmp.eq.s32.totalorder %s13, 0
      %p96 = por %p94, %p95
      %p97 = scmp.ne.s32.totalorder %s89, %s91
      %p98 = scmp.eq.s32.totalorder %s18, 1
      %p99 = por %p97, %p98
      %p100 = scmp.ne.s32.totalorder %s91, %s92
      %p101 = scmp.eq.s32.totalorder %s18, 0
      %p102 = por %p100, %p101
      %p103 = scmp.ne.s32.totalorder %s91, %s92
      %p104 = scmp.eq.s32.totalorder %s19, 1
      %p105 = por %p103, %p104
      %p107 = scmp.ne.s32.totalorder %s92, %s106
      %p108 = scmp.eq.s32.totalorder %s19, 0
      %p109 = por %p107, %p108
      %s110 = ssub.s32 %s13, %s20
      %p111 = scmp.eq.s32.totalorder %s110, 0
      %s113 = sadd.s32 %s112, 1
      %s114 = scalar_select %p111, %s112, %s113
      %p117 = pneg %p111
      %p118 = scmp.eq.s32.totalorder %s13, 1
      %p119 = por %p117, %p118
      %p120 = scmp.ne.s32.totalorder %s112, %s115
      %p121 = scmp.eq.s32.totalorder %s13, 0
      %p122 = por %p120, %p121
      %p123 = scmp.ne.s32.totalorder %s112, %s115
      %p124 = scmp.eq.s32.totalorder %s18, 1
      %p125 = por %p123, %p124
      %p126 = scmp.ne.s32.totalorder %s115, %s116
      %p127 = scmp.eq.s32.totalorder %s18, 0
      %p128 = por %p126, %p127
      %p129 = scmp.ne.s32.totalorder %s115, %s116
      %p130 = scmp.eq.s32.totalorder %s19, 1
      %p131 = por %p129, %p130
      %p133 = scmp.ne.s32.totalorder %s116, %s132
      %p134 = scmp.eq.s32.totalorder %s19, 0
      %p135 = por %p133, %p134
      %p136 = scmp.le.s32.totalorder 1, %s13
      %p137 = scmp.lt.s32.totalorder %s13, 3
      %p138 = pnand %p136, %p137
      %p139 = pneg %p138
      // Predicated region
      $region9: #{tpu_custom_call.1} parent=5 // pred_check
        _
      $region10: #{tpu_custom_call.1} parent=5 // pred_check_branch
        %141 = sbr.rel (%p138) target = $region12
      $region11: #{tpu_custom_call.1} parent=5 // pred_region
        %s142 = ssub.s32 %s13, 1
        // Predicated region
        $region13: #{tpu_custom_call.1} parent=11 // pred_check
          %p143 = pneg %p60
        $region14: #{tpu_custom_call.1} parent=11 // pred_check_branch
          %145 = sbr.rel (%p143) target = $region16
        $region15: #{tpu_custom_call.1} parent=11 // pred_region
          _
        $region16: #{tpu_custom_call.1} parent=11 // pred_fallthru
          _
        // Predicated region
        $region17: #{tpu_custom_call.1} parent=11 // pred_check
          %p146 = pneg %p81
        $region18: #{tpu_custom_call.1} parent=11 // pred_check_branch
          %148 = sbr.rel (%p146) target = $region20
        $region19: #{tpu_custom_call.1} parent=11 // pred_region
          _
        $region20: #{tpu_custom_call.1} parent=11 // pred_fallthru
          _
        // Predicated region
        $region21: #{tpu_custom_call.1} parent=11 // pred_check
          %p149 = pneg %p102
        $region22: #{tpu_custom_call.1} parent=11 // pred_check_branch
          %151 = sbr.rel (%p149) target = $region24
        $region23: #{tpu_custom_call.1} parent=11 // pred_region
          _
        $region24: #{tpu_custom_call.1} parent=11 // pred_fallthru
          _
      $region12: #{tpu_custom_call.1} parent=5 // pred_fallthru
        _
      %p152 = scmp.lt.s32.totalorder %s13, 2
      // Predicated region
      $region25: #{tpu_custom_call.1} parent=5 // pred_check
        %p153 = pneg %p152
      $region26: #{tpu_custom_call.1} parent=5 // pred_check_branch
        %155 = sbr.rel (%p153) target = $region28
      $region27: #{tpu_custom_call.1} parent=5 // pred_region
        // Predicated region
        $region29: #{tpu_custom_call.1} parent=27 // pred_check
          %p156 = pneg %p33
        $region30: #{tpu_custom_call.1} parent=27 // pred_check_branch
          %158 = sbr.rel (%p156) target = $region32
        $region31: #{tpu_custom_call.1} parent=27 // pred_region
          %s159 = smul.u32 32, %s13
          %p160 = scmp.lt.s32.totalorder %s159, 63
          %s161 = scalar_select %p160, %s159, 63
          %s162 = smul.addr %s161, 2
          %s163 = smul.addr %s162, 4
          %s164 = scalar_lea.vmem %s0, %s163
          %s165 = smul.u32 32, %s13
        $region32: #{tpu_custom_call.1} parent=27 // pred_fallthru
          _
      $region28: #{tpu_custom_call.1} parent=5 // pred_fallthru
        _
      %p166 = scmp.le.s32.totalorder 1, %s13
      %p167 = scmp.lt.s32.totalorder %s13, 3
      %p168 = pnand %p166, %p167
      %p169 = pneg %p168
      // Predicated region
      $region33: #{tpu_custom_call.1} parent=5 // pred_check
        _
      $region34: #{tpu_custom_call.1} parent=5 // pred_check_branch
        %171 = sbr.rel (%p168) target = $region36
      $region35: #{tpu_custom_call.1} parent=5 // pred_region
        %s172 = ssub.s32 %s13, 1
        %s173 = smul.u32 32, %s18
        %p174 = scmp.lt.s32.totalorder %s173, 63
        %s175 = scalar_select %p174, %s173, 63
        %s176 = smul.addr %s175, 2
        %s177 = smul.addr %s176, 4
        %s178 = scalar_lea.vmem %s0, %s177
        %p179 = pneg %p39
        %p180 = pneg %p36
        %p181 = pneg %p60
        %p182 = pneg %p57
        %p183 = pneg %p81
        %p184 = pneg %p78
        %p185 = pneg %p102
        %p186 = pneg %p99
        %p187 = pneg %p128
        %p188 = pneg %p125
        %s189 = sand.u32 %s115, 1
        %s190 = scalar_lea.sflag [#allocation3], %s189
        %s191 = sand.u32 %s115, 1
        %s192 = smul.addr %s191, 128
        %s193 = scalar_lea.vmem [#allocation2], %s192
        %s194 = smul.u32 32, %s18
        %p195 = scmp.lt.s32.totalorder %s194, 63
        %s196 = scalar_select %p195, %s194, 63
        %s197 = smul.addr %s196, 2
        %s198 = smul.addr %s197, 4
        %s199 = scalar_lea.vmem %s0, %s198
        %s200 = smul.u32 32, %s18
        %s201 = smul.u32 32, %s18
        %v203 = vld [vmem:[%s199] sm:$0xff]
        %v204 = vld [vmem:[%s199 + $0x8] sm:$0xff]
        %v205 = vld [vmem:[%s199 + $0x10] sm:$0xff]
        %v206 = vld [vmem:[%s199 + $0x18] sm:$0xff]
        %v207 = vld [vmem:[%s199 + $0x20] sm:$0xff]
        %v208 = vld [vmem:[%s199 + $0x28] sm:$0xff]
        %v209 = vld [vmem:[%s199 + $0x30] sm:$0xff]
        %v210 = vld [vmem:[%s199 + $0x38] sm:$0xff]
        %v211 = vld [vmem:[%s199 + $0x40] sm:$0xff]
        %v212 = vld [vmem:[%s199 + $0x48] sm:$0xff]
        %v213 = vld [vmem:[%s199 + $0x50] sm:$0xff]
        %v214 = vld [vmem:[%s199 + $0x58] sm:$0xff]
        %v215 = vld [vmem:[%s199 + $0x60] sm:$0xff]
        %v216 = vld [vmem:[%s199 + $0x68] sm:$0xff]
        %v217 = vld [vmem:[%s199 + $0x70] sm:$0xff]
        %v218 = vld [vmem:[%s199 + $0x78] sm:$0xff]
        %v219 = vld [vmem:[%s199 + $0x80] sm:$0xff]
        %v220 = vld [vmem:[%s199 + $0x88] sm:$0xff]
        %v221 = vld [vmem:[%s199 + $0x90] sm:$0xff]
        %v222 = vld [vmem:[%s199 + $0x98] sm:$0xff]
        %v223 = vld [vmem:[%s199 + $0xa0] sm:$0xff]
        %v224 = vld [vmem:[%s199 + $0xa8] sm:$0xff]
        %v225 = vld [vmem:[%s199 + $0xb0] sm:$0xff]
        %v226 = vld [vmem:[%s199 + $0xb8] sm:$0xff]
        %v227 = vld [vmem:[%s199 + $0xc0] sm:$0xff]
        %v228 = vld [vmem:[%s199 + $0xc8] sm:$0xff]
        %v229 = vld [vmem:[%s199 + $0xd0] sm:$0xff]
        %v230 = vld [vmem:[%s199 + $0xd8] sm:$0xff]
        %v231 = vld [vmem:[%s199 + $0xe0] sm:$0xff]
        %v232 = vld [vmem:[%s199 + $0xe8] sm:$0xff]
        %v233 = vld [vmem:[%s199 + $0xf0] sm:$0xff]
        %v234 = vld [vmem:[%s199 + $0xf8] sm:$0xff]
        %v235 = vld [vmem:[%s1] sm:$0xf]
        %v236 = vld [vmem:[%s1 + $0x4] sm:$0xf]
        %v237 = vld [vmem:[%s1 + $0x8] sm:$0xf]
        %v238 = vld [vmem:[%s1 + $0xc] sm:$0xf]
        %v239 = vld [vmem:[%s1 + $0x10] sm:$0xf]
        %v240 = vld [vmem:[%s1 + $0x14] sm:$0xf]
        %v241 = vld [vmem:[%s1 + $0x18] sm:$0xf]
        %v242 = vld [vmem:[%s1 + $0x1c] sm:$0xf]
        %v243 = vld [vmem:[%s1 + $0x20] sm:$0xf]
        %v244 = vld [vmem:[%s1 + $0x24] sm:$0xf]
        %v245 = vld [vmem:[%s1 + $0x28] sm:$0xf]
        %v246 = vld [vmem:[%s1 + $0x2c] sm:$0xf]
        %v247 = vld [vmem:[%s1 + $0x30] sm:$0xf]
        %v248 = vld [vmem:[%s1 + $0x34] sm:$0xf]
        %v249 = vld [vmem:[%s1 + $0x38] sm:$0xf]
        %v250 = vld [vmem:[%s1 + $0x3c] sm:$0xf]
        %v251 = vld [vmem:[%s1 + $0x40] sm:$0xf]
        %v252 = vld [vmem:[%s1 + $0x44] sm:$0xf]
        %v253 = vld [vmem:[%s1 + $0x48] sm:$0x3]
        %v286 = vunpack.c.l.b16 %v203
        %v287 = vunpack.c.h.b16 %v203
        %v288 = vunpack.c.l.b16 %v204
        %v289 = vunpack.c.h.b16 %v204
        %v290 = vunpack.c.l.b16 %v205
        %v291 = vunpack.c.h.b16 %v205
        %v292 = vunpack.c.l.b16 %v206
        %v293 = vunpack.c.h.b16 %v206
        %v294 = vunpack.c.l.b16 %v207
        %v295 = vunpack.c.h.b16 %v207
        %v296 = vunpack.c.l.b16 %v208
        %v297 = vunpack.c.h.b16 %v208
        %v298 = vunpack.c.l.b16 %v209
        %v299 = vunpack.c.h.b16 %v209
        %v300 = vunpack.c.l.b16 %v210
        %v301 = vunpack.c.h.b16 %v210
        %v302 = vunpack.c.l.b16 %v211
        %v303 = vunpack.c.h.b16 %v211
        %v304 = vunpack.c.l.b16 %v212
        %v305 = vunpack.c.h.b16 %v212
        %v306 = vunpack.c.l.b16 %v213
        %v307 = vunpack.c.h.b16 %v213
        %v308 = vunpack.c.l.b16 %v214
        %v309 = vunpack.c.h.b16 %v214
        %v310 = vunpack.c.l.b16 %v215
        %v311 = vunpack.c.h.b16 %v215
        %v312 = vunpack.c.l.b16 %v216
        %v313 = vunpack.c.h.b16 %v216
        %v314 = vunpack.c.l.b16 %v217
        %v315 = vunpack.c.h.b16 %v217
        %v316 = vunpack.c.l.b16 %v218
        %v317 = vunpack.c.h.b16 %v218
        %v318 = vunpack.c.l.b16 %v219
        %v319 = vunpack.c.h.b16 %v219
        %v320 = vunpack.c.l.b16 %v220
        %v321 = vunpack.c.h.b16 %v220
        %v322 = vunpack.c.l.b16 %v221
        %v323 = vunpack.c.h.b16 %v221
        %v324 = vunpack.c.l.b16 %v222
        %v325 = vunpack.c.h.b16 %v222
        %v326 = vunpack.c.l.b16 %v223
        %v327 = vunpack.c.h.b16 %v223
        %v328 = vunpack.c.l.b16 %v224
        %v329 = vunpack.c.h.b16 %v224
        %v330 = vunpack.c.l.b16 %v225
        %v331 = vunpack.c.h.b16 %v225
        %v332 = vunpack.c.l.b16 %v226
        %v333 = vunpack.c.h.b16 %v226
        %v334 = vunpack.c.l.b16 %v227
        %v335 = vunpack.c.h.b16 %v227
        %v336 = vunpack.c.l.b16 %v228
        %v337 = vunpack.c.h.b16 %v228
        %v338 = vunpack.c.l.b16 %v229
        %v339 = vunpack.c.h.b16 %v229
        %v340 = vunpack.c.l.b16 %v230
        %v341 = vunpack.c.h.b16 %v230
        %v342 = vunpack.c.l.b16 %v231
        %v343 = vunpack.c.h.b16 %v231
        %v344 = vunpack.c.l.b16 %v232
        %v345 = vunpack.c.h.b16 %v232
        %v346 = vunpack.c.l.b16 %v233
        %v347 = vunpack.c.h.b16 %v233
        %v348 = vunpack.c.l.b16 %v234
        %v349 = vunpack.c.h.b16 %v234
        %v350 = vpack.c.b16 %v288, %v286
        %v351 = vpack.c.b16 %v289, %v287
        %v352 = vpack.c.b16 %v292, %v290
        %v353 = vpack.c.b16 %v293, %v291
        %v354 = vpack.c.b16 %v296, %v294
        %v355 = vpack.c.b16 %v297, %v295
        %v356 = vpack.c.b16 %v300, %v298
        %v357 = vpack.c.b16 %v301, %v299
        %v358 = vpack.c.b16 %v304, %v302
        %v359 = vpack.c.b16 %v305, %v303
        %v360 = vpack.c.b16 %v308, %v306
        %v361 = vpack.c.b16 %v309, %v307
        %v362 = vpack.c.b16 %v312, %v310
        %v363 = vpack.c.b16 %v313, %v311
        %v364 = vpack.c.b16 %v316, %v314
        %v365 = vpack.c.b16 %v317, %v315
        %v366 = vpack.c.b16 %v320, %v318
        %v367 = vpack.c.b16 %v321, %v319
        %v368 = vpack.c.b16 %v324, %v322
        %v369 = vpack.c.b16 %v325, %v323
        %v370 = vpack.c.b16 %v328, %v326
        %v371 = vpack.c.b16 %v329, %v327
        %v372 = vpack.c.b16 %v332, %v330
        %v373 = vpack.c.b16 %v333, %v331
        %v374 = vpack.c.b16 %v336, %v334
        %v375 = vpack.c.b16 %v337, %v335
        %v376 = vpack.c.b16 %v340, %v338
        %v377 = vpack.c.b16 %v341, %v339
        %v378 = vpack.c.b16 %v344, %v342
        %v379 = vpack.c.b16 %v345, %v343
        %v380 = vpack.c.b16 %v348, %v346
        %v381 = vpack.c.b16 %v349, %v347
        %v417 = vunpack.c.l.b16 %v235
        %v418 = vunpack.c.l.b16 %v236
        %v419 = vunpack.c.l.b16 %v237
        %v420 = vunpack.c.l.b16 %v238
        %v421 = vunpack.c.l.b16 %v239
        %v422 = vunpack.c.l.b16 %v240
        %v423 = vunpack.c.l.b16 %v241
        %v424 = vunpack.c.l.b16 %v242
        %v425 = vunpack.c.l.b16 %v243
        %v426 = vunpack.c.l.b16 %v244
        %v427 = vunpack.c.l.b16 %v245
        %v428 = vunpack.c.l.b16 %v246
        %v429 = vunpack.c.l.b16 %v247
        %v430 = vunpack.c.l.b16 %v248
        %v431 = vunpack.c.l.b16 %v249
        %v432 = vunpack.c.l.b16 %v250
        %v433 = vunpack.c.l.b16 %v251
        %v434 = vunpack.c.l.b16 %v252
        %v435 = vunpack.c.l.b16 %v253
        %v436 = vpack.c.b16 %v418, %v417
        %v437 = vpack.c.b16 %v420, %v419
        %v438 = vpack.c.b16 %v422, %v421
        %v439 = vpack.c.b16 %v424, %v423
        %v440 = vpack.c.b16 %v426, %v425
        %v441 = vpack.c.b16 %v428, %v427
        %v442 = vpack.c.b16 %v430, %v429
        %v443 = vpack.c.b16 %v432, %v431
        %v444 = vpack.c.b16 %v434, %v433
        %v445 = vpack.c.b16 %v435, %v435
        %vm455 = vcmask 154624
        %v457 = vsel %vm455, %v351, 0
        %v460 = vsel %vm455, %v353, 0
        %v463 = vsel %vm455, %v355, 0
        %v466 = vsel %vm455, %v357, 0
        %v469 = vsel %vm455, %v359, 0
        %v472 = vsel %vm455, %v361, 0
        %v475 = vsel %vm455, %v363, 0
        %v478 = vsel %vm455, %v365, 0
        %v481 = vsel %vm455, %v367, 0
        %v484 = vsel %vm455, %v369, 0
        %v487 = vsel %vm455, %v371, 0
        %v490 = vsel %vm455, %v373, 0
        %v493 = vsel %vm455, %v375, 0
        %v496 = vsel %vm455, %v377, 0
        %v499 = vsel %vm455, %v379, 0
        %v502 = vsel %vm455, %v381, 0
        %vm504 = vcmask 1040384
        %vm505 = vcmask 1041408
        %v506 = vsel %vm504, 4294967295, 65535
        %v507 = vsel %vm505, %v506, 0
        %v509 = vand.u32 %v445, %v507
        %511 = vmatprep.subr.bf16.mxu0 0
        %512 = vmatpush1.bf16.msra.mxu0 %v436
        %513 = vmatprep.subr.bf16.mxu0 0
        %514 = vmatpush1.bf16.msra.mxu0 %v437
        %515 = vmatprep.subr.bf16.mxu0 0
        %516 = vmatpush1.bf16.msra.mxu0 %v438
        %517 = vmatprep.subr.bf16.mxu0 0
        %518 = vmatpush1.bf16.msra.mxu0 %v439
        %519 = vmatprep.subr.bf16.mxu0 0
        %520 = vmatpush1.bf16.msra.mxu0 %v440
        %521 = vmatprep.subr.bf16.mxu0 0
        %522 = vmatpush1.bf16.msra.mxu0 %v441
        %523 = vmatprep.subr.bf16.mxu0 0
        %524 = vmatpush1.bf16.msra.mxu0 %v442
        %525 = vmatprep.subr.bf16.mxu0 0
        %526 = vmatpush1.bf16.msra.mxu0 %v443
        %527 = vmatprep.subr.bf16.mxu0 0
        %528 = vmatpush1.bf16.msra.mxu0 %v444
        %529 = vmatprep.subr.bf16.mxu0 0
        %530 = vmatpush1.bf16.msra.mxu0 %v509
        %531 = vmatprep.subr.bf16.mxu0 0
        %532 = vmatpush1.bf16.msra.mxu0 0
        %533 = vmatprep.subr.bf16.mxu0 0
        %534 = vmatpush1.bf16.msra.mxu0 0
        %535 = vmatprep.subr.bf16.mxu0 0
        %536 = vmatpush1.bf16.msra.mxu0 0
        %537 = vmatprep.subr.bf16.mxu0 0
        %538 = vmatpush1.bf16.msra.mxu0 0
        %539 = vmatprep.subr.bf16.mxu0 0
        %540 = vmatpush1.bf16.msra.mxu0 0
        %541 = vmatprep.subr.bf16.mxu0 0
        %542 = vmatpush1.bf16.msra.mxu0 0
        %543 = vmatprep.mubr.bf16.mxu0 %v457
        %544 = vmatmul.mubr.bf16.gmra.mrb[0].mxu0 %v350
        %v545 = vpop.f32.mrb[0].mxu0
        %v546 = vadd.f32 0.0, %v545
        %v547 = vpop.f32.mrb[0].mxu0
        %v548 = vpop.f32.mrb[0].mxu0
        %v549 = vadd.f32 0.0, %v548
        %v550 = vpop.f32.mrb[0].mxu0
        %551 = vmatprep.mubr.bf16.mxu0 %v460
        %552 = vmatmul.mubr.bf16.gmra.mrb[0].mxu0 %v352
        %v553 = vpop.f32.mrb[0].mxu0
        %v554 = vadd.f32 0.0, %v553
        %v555 = vpop.f32.mrb[0].mxu0
        %v556 = vpop.f32.mrb[0].mxu0
        %v557 = vadd.f32 0.0, %v556
        %v558 = vpop.f32.mrb[0].mxu0
        %559 = vmatprep.mubr.bf16.mxu0 %v463
        %560 = vmatmul.mubr.bf16.gmra.mrb[0].mxu0 %v354
        %v561 = vpop.f32.mrb[0].mxu0
        %v562 = vadd.f32 0.0, %v561
        %v563 = vpop.f32.mrb[0].mxu0
        %v564 = vpop.f32.mrb[0].mxu0
        %v565 = vadd.f32 0.0, %v564
        %v566 = vpop.f32.mrb[0].mxu0
        %567 = vmatprep.mubr.bf16.mxu0 %v466
        %568 = vmatmul.mubr.bf16.gmra.mrb[0].mxu0 %v356
        %v569 = vpop.f32.mrb[0].mxu0
        %v570 = vadd.f32 0.0, %v569
        %v571 = vpop.f32.mrb[0].mxu0
        %v572 = vpop.f32.mrb[0].mxu0
        %v573 = vadd.f32 0.0, %v572
        %v574 = vpop.f32.mrb[0].mxu0
        %575 = vmatprep.mubr.bf16.mxu0 %v469
        %576 = vmatmul.mubr.bf16.gmra.mrb[0].mxu0 %v358
        %v577 = vpop.f32.mrb[0].mxu0
        %v578 = vadd.f32 0.0, %v577
        %v579 = vpop.f32.mrb[0].mxu0
        %v580 = vpop.f32.mrb[0].mxu0
        %v581 = vadd.f32 0.0, %v580
        %v582 = vpop.f32.mrb[0].mxu0
        %583 = vmatprep.mubr.bf16.mxu0 %v472
        %584 = vmatmul.mubr.bf16.gmra.mrb[0].mxu0 %v360
        %v585 = vpop.f32.mrb[0].mxu0
        %v586 = vadd.f32 0.0, %v585
        %v587 = vpop.f32.mrb[0].mxu0
        %v588 = vpop.f32.mrb[0].mxu0
        %v589 = vadd.f32 0.0, %v588
        %v590 = vpop.f32.mrb[0].mxu0
        %591 = vmatprep.mubr.bf16.mxu0 %v475
        %592 = vmatmul.mubr.bf16.gmra.mrb[0].mxu0 %v362
        %v593 = vpop.f32.mrb[0].mxu0
        %v594 = vadd.f32 0.0, %v593
        %v595 = vpop.f32.mrb[0].mxu0
        %v596 = vpop.f32.mrb[0].mxu0
        %v597 = vadd.f32 0.0, %v596
        %v598 = vpop.f32.mrb[0].mxu0
        %599 = vmatprep.mubr.bf16.mxu0 %v478
        %600 = vmatmul.mubr.bf16.gmra.mrb[0].mxu0 %v364
        %v601 = vpop.f32.mrb[0].mxu0
        %v602 = vadd.f32 0.0, %v601
        %v603 = vpop.f32.mrb[0].mxu0
        %v604 = vpop.f32.mrb[0].mxu0
        %v605 = vadd.f32 0.0, %v604
        %v606 = vpop.f32.mrb[0].mxu0
        %607 = vmatprep.mubr.bf16.mxu0 %v481
        %608 = vmatmul.mubr.bf16.gmra.mrb[0].mxu0 %v366
        %v609 = vpop.f32.mrb[0].mxu0
        %v610 = vadd.f32 0.0, %v609
        %v611 = vpop.f32.mrb[0].mxu0
        %v612 = vpop.f32.mrb[0].mxu0
        %v613 = vadd.f32 0.0, %v612
        %v614 = vpop.f32.mrb[0].mxu0
        %615 = vmatprep.mubr.bf16.mxu0 %v484
        %616 = vmatmul.mubr.bf16.gmra.mrb[0].mxu0 %v368
        %v617 = vpop.f32.mrb[0].mxu0
        %v618 = vadd.f32 0.0, %v617
        %v619 = vpop.f32.mrb[0].mxu0
        %v620 = vpop.f32.mrb[0].mxu0
        %v621 = vadd.f32 0.0, %v620
        %v622 = vpop.f32.mrb[0].mxu0
        %623 = vmatprep.mubr.bf16.mxu0 %v487
        %624 = vmatmul.mubr.bf16.gmra.mrb[0].mxu0 %v370
        %v625 = vpop.f32.mrb[0].mxu0
        %v626 = vadd.f32 0.0, %v625
        %v627 = vpop.f32.mrb[0].mxu0
        %v628 = vpop.f32.mrb[0].mxu0
        %v629 = vadd.f32 0.0, %v628
        %v630 = vpop.f32.mrb[0].mxu0
        %631 = vmatprep.mubr.bf16.mxu0 %v490
        %632 = vmatmul.mubr.bf16.gmra.mrb[0].mxu0 %v372
        %v633 = vpop.f32.mrb[0].mxu0
        %v634 = vadd.f32 0.0, %v633
        %v635 = vpop.f32.mrb[0].mxu0
        %v636 = vpop.f32.mrb[0].mxu0
        %v637 = vadd.f32 0.0, %v636
        %v638 = vpop.f32.mrb[0].mxu0
        %639 = vmatprep.mubr.bf16.mxu0 %v493
        %640 = vmatmul.mubr.bf16.gmra.mrb[0].mxu0 %v374
        %v641 = vpop.f32.mrb[0].mxu0
        %v642 = vadd.f32 0.0, %v641
        %v643 = vpop.f32.mrb[0].mxu0
        %v644 = vpop.f32.mrb[0].mxu0
        %v645 = vadd.f32 0.0, %v644
        %v646 = vpop.f32.mrb[0].mxu0
        %647 = vmatprep.mubr.bf16.mxu0 %v496
        %648 = vmatmul.mubr.bf16.gmra.mrb[0].mxu0 %v376
        %v649 = vpop.f32.mrb[0].mxu0
        %v650 = vadd.f32 0.0, %v649
        %v651 = vpop.f32.mrb[0].mxu0
        %v652 = vpop.f32.mrb[0].mxu0
        %v653 = vadd.f32 0.0, %v652
        %v654 = vpop.f32.mrb[0].mxu0
        %655 = vmatprep.mubr.bf16.mxu0 %v499
        %656 = vmatmul.mubr.bf16.gmra.mrb[0].mxu0 %v378
        %v657 = vpop.f32.mrb[0].mxu0
        %v658 = vadd.f32 0.0, %v657
        %v659 = vpop.f32.mrb[0].mxu0
        %v660 = vpop.f32.mrb[0].mxu0
        %v661 = vadd.f32 0.0, %v660
        %v662 = vpop.f32.mrb[0].mxu0
        %663 = vmatprep.mubr.bf16.mxu0 %v502
        %664 = vmatmul.mubr.bf16.gmra.mrb[0].mxu0 %v380
        %v665 = vpop.f32.mrb[0].mxu0
        %v666 = vadd.f32 0.0, %v665
        %v667 = vpop.f32.mrb[0].mxu0
        %v668 = vpop.f32.mrb[0].mxu0
        %v669 = vadd.f32 0.0, %v668
        %v670 = vpop.f32.mrb[0].mxu0
        %671 = vdwg.mxu0
        %v672 = vld [vmem:[%s2] sm:$0x1]
        %v674 = vlaneseq
        %v675 = vshrl.u32 %v674, 7
        %v676 = vsub.s32 0, %v675
        %v677 = vrot.slane %v672, %v676
        %v679 = vmul.f32 %v546, %v677
        %v680 = vmul.f32 %v549, %v677
        %v681 = vmul.f32 %v554, %v677
        %v682 = vmul.f32 %v557, %v677
        %v683 = vmul.f32 %v562, %v677
        %v684 = vmul.f32 %v565, %v677
        %v685 = vmul.f32 %v570, %v677
        %v686 = vmul.f32 %v573, %v677
        %v687 = vmul.f32 %v578, %v677
        %v688 = vmul.f32 %v581, %v677
        %v689 = vmul.f32 %v586, %v677
        %v690 = vmul.f32 %v589, %v677
        %v691 = vmul.f32 %v594, %v677
        %v692 = vmul.f32 %v597, %v677
        %v693 = vmul.f32 %v602, %v677
        %v694 = vmul.f32 %v605, %v677
        %v695 = vmul.f32 %v610, %v677
        %v696 = vmul.f32 %v613, %v677
        %v697 = vmul.f32 %v618, %v677
        %v698 = vmul.f32 %v621, %v677
        %v699 = vmul.f32 %v626, %v677
        %v700 = vmul.f32 %v629, %v677
        %v701 = vmul.f32 %v634, %v677
        %v702 = vmul.f32 %v637, %v677
        %v703 = vmul.f32 %v642, %v677
        %v704 = vmul.f32 %v645, %v677
        %v705 = vmul.f32 %v650, %v677
        %v706 = vmul.f32 %v653, %v677
        %v707 = vmul.f32 %v658, %v677
        %v708 = vmul.f32 %v661, %v677
        %v709 = vmul.f32 %v666, %v677
        %v710 = vmul.f32 %v669, %v677
        %v711 = vld [vmem:[%s3] sm:$0x1]
        %v713 = vlaneseq
        %v714 = vshrl.u32 %v713, 7
        %v715 = vsub.s32 0, %v714
        %v716 = vrot.slane %v711, %v715
        %v718 = vadd.f32 %v679, %v716
        %v719 = vadd.f32 %v680, %v716
        %v720 = vadd.f32 %v681, %v716
        %v721 = vadd.f32 %v682, %v716
        %v722 = vadd.f32 %v683, %v716
        %v723 = vadd.f32 %v684, %v716
        %v724 = vadd.f32 %v685, %v716
        %v725 = vadd.f32 %v686, %v716
        %v726 = vadd.f32 %v687, %v716
        %v727 = vadd.f32 %v688, %v716
        %v728 = vadd.f32 %v689, %v716
        %v729 = vadd.f32 %v690, %v716
        %v730 = vadd.f32 %v691, %v716
        %v731 = vadd.f32 %v692, %v716
        %v732 = vadd.f32 %v693, %v716
        %v733 = vadd.f32 %v694, %v716
        %v734 = vadd.f32 %v695, %v716
        %v735 = vadd.f32 %v696, %v716
        %v736 = vadd.f32 %v697, %v716
        %v737 = vadd.f32 %v698, %v716
        %v738 = vadd.f32 %v699, %v716
        %v739 = vadd.f32 %v700, %v716
        %v740 = vadd.f32 %v701, %v716
        %v741 = vadd.f32 %v702, %v716
        %v742 = vadd.f32 %v703, %v716
        %v743 = vadd.f32 %v704, %v716
        %v744 = vadd.f32 %v705, %v716
        %v745 = vadd.f32 %v706, %v716
        %v746 = vadd.f32 %v707, %v716
        %v747 = vadd.f32 %v708, %v716
        %v748 = vadd.f32 %v709, %v716
        %v749 = vadd.f32 %v710, %v716
        %v750 = vmax.f32 %v718, 0.0
        %v751 = vmax.f32 %v719, 0.0
        %v752 = vmax.f32 %v720, 0.0
        %v753 = vmax.f32 %v721, 0.0
        %v754 = vmax.f32 %v722, 0.0
        %v755 = vmax.f32 %v723, 0.0
        %v756 = vmax.f32 %v724, 0.0
        %v757 = vmax.f32 %v725, 0.0
        %v758 = vmax.f32 %v726, 0.0
        %v759 = vmax.f32 %v727, 0.0
        %v760 = vmax.f32 %v728, 0.0
        %v761 = vmax.f32 %v729, 0.0
        %v762 = vmax.f32 %v730, 0.0
        %v763 = vmax.f32 %v731, 0.0
        %v764 = vmax.f32 %v732, 0.0
        %v765 = vmax.f32 %v733, 0.0
        %v766 = vmax.f32 %v734, 0.0
        %v767 = vmax.f32 %v735, 0.0
        %v768 = vmax.f32 %v736, 0.0
        %v769 = vmax.f32 %v737, 0.0
        %v770 = vmax.f32 %v738, 0.0
        %v771 = vmax.f32 %v739, 0.0
        %v772 = vmax.f32 %v740, 0.0
        %v773 = vmax.f32 %v741, 0.0
        %v774 = vmax.f32 %v742, 0.0
        %v775 = vmax.f32 %v743, 0.0
        %v776 = vmax.f32 %v744, 0.0
        %v777 = vmax.f32 %v745, 0.0
        %v778 = vmax.f32 %v746, 0.0
        %v779 = vmax.f32 %v747, 0.0
        %v780 = vmax.f32 %v748, 0.0
        %v781 = vmax.f32 %v749, 0.0
        %v782 = vpack.c.bf16 %v751, %v750
        %v783 = vpack.c.bf16 %v753, %v752
        %v784 = vpack.c.bf16 %v755, %v754
        %v785 = vpack.c.bf16 %v757, %v756
        %v786 = vpack.c.bf16 %v759, %v758
        %v787 = vpack.c.bf16 %v761, %v760
        %v788 = vpack.c.bf16 %v763, %v762
        %v789 = vpack.c.bf16 %v765, %v764
        %v790 = vpack.c.bf16 %v767, %v766
        %v791 = vpack.c.bf16 %v769, %v768
        %v792 = vpack.c.bf16 %v771, %v770
        %v793 = vpack.c.bf16 %v773, %v772
        %v794 = vpack.c.bf16 %v775, %v774
        %v795 = vpack.c.bf16 %v777, %v776
        %v796 = vpack.c.bf16 %v779, %v778
        %v797 = vpack.c.bf16 %v781, %v780
        %v814 = vunpack.c.l.b16 %v782
        %v815 = vunpack.c.h.b16 %v782
        %v816 = vunpack.c.l.b16 %v783
        %v817 = vunpack.c.h.b16 %v783
        %v818 = vunpack.c.l.b16 %v784
        %v819 = vunpack.c.h.b16 %v784
        %v820 = vunpack.c.l.b16 %v785
        %v821 = vunpack.c.h.b16 %v785
        %v822 = vunpack.c.l.b16 %v786
        %v823 = vunpack.c.h.b16 %v786
        %v824 = vunpack.c.l.b16 %v787
        %v825 = vunpack.c.h.b16 %v787
        %v826 = vunpack.c.l.b16 %v788
        %v827 = vunpack.c.h.b16 %v788
        %v828 = vunpack.c.l.b16 %v789
        %v829 = vunpack.c.h.b16 %v789
        %v830 = vunpack.c.l.b16 %v790
        %v831 = vunpack.c.h.b16 %v790
        %v832 = vunpack.c.l.b16 %v791
        %v833 = vunpack.c.h.b16 %v791
        %v834 = vunpack.c.l.b16 %v792
        %v835 = vunpack.c.h.b16 %v792
        %v836 = vunpack.c.l.b16 %v793
        %v837 = vunpack.c.h.b16 %v793
        %v838 = vunpack.c.l.b16 %v794
        %v839 = vunpack.c.h.b16 %v794
        %v840 = vunpack.c.l.b16 %v795
        %v841 = vunpack.c.h.b16 %v795
        %v842 = vunpack.c.l.b16 %v796
        %v843 = vunpack.c.h.b16 %v796
        %v844 = vunpack.c.l.b16 %v797
        %v845 = vunpack.c.h.b16 %v797
        %v846 = vpack.c.b16 %v814, %v814
        %v847 = vpack.c.b16 %v815, %v815
        %v848 = vpack.c.b16 %v816, %v816
        %v849 = vpack.c.b16 %v817, %v817
        %v850 = vpack.c.b16 %v818, %v818
        %v851 = vpack.c.b16 %v819, %v819
        %v852 = vpack.c.b16 %v820, %v820
        %v853 = vpack.c.b16 %v821, %v821
        %v854 = vpack.c.b16 %v822, %v822
        %v855 = vpack.c.b16 %v823, %v823
        %v856 = vpack.c.b16 %v824, %v824
        %v857 = vpack.c.b16 %v825, %v825
        %v858 = vpack.c.b16 %v826, %v826
        %v859 = vpack.c.b16 %v827, %v827
        %v860 = vpack.c.b16 %v828, %v828
        %v861 = vpack.c.b16 %v829, %v829
        %v862 = vpack.c.b16 %v830, %v830
        %v863 = vpack.c.b16 %v831, %v831
        %v864 = vpack.c.b16 %v832, %v832
        %v865 = vpack.c.b16 %v833, %v833
        %v866 = vpack.c.b16 %v834, %v834
        %v867 = vpack.c.b16 %v835, %v835
        %v868 = vpack.c.b16 %v836, %v836
        %v869 = vpack.c.b16 %v837, %v837
        %v870 = vpack.c.b16 %v838, %v838
        %v871 = vpack.c.b16 %v839, %v839
        %v872 = vpack.c.b16 %v840, %v840
        %v873 = vpack.c.b16 %v841, %v841
        %v874 = vpack.c.b16 %v842, %v842
        %v875 = vpack.c.b16 %v843, %v843
        %v876 = vpack.c.b16 %v844, %v844
        %v877 = vpack.c.b16 %v845, %v845
        %910 = vst [vmem:[%s193] sm:$0xf] %v846
        %911 = vst [vmem:[%s193 + $0x4] sm:$0xf] %v847
        %912 = vst [vmem:[%s193 + $0x8] sm:$0xf] %v848
        %913 = vst [vmem:[%s193 + $0xc] sm:$0xf] %v849
        %914 = vst [vmem:[%s193 + $0x10] sm:$0xf] %v850
        %915 = vst [vmem:[%s193 + $0x14] sm:$0xf] %v851
        %916 = vst [vmem:[%s193 + $0x18] sm:$0xf] %v852
        %917 = vst [vmem:[%s193 + $0x1c] sm:$0xf] %v853
        %918 = vst [vmem:[%s193 + $0x20] sm:$0xf] %v854
        %919 = vst [vmem:[%s193 + $0x24] sm:$0xf] %v855
        %920 = vst [vmem:[%s193 + $0x28] sm:$0xf] %v856
        %921 = vst [vmem:[%s193 + $0x2c] sm:$0xf] %v857
        %922 = vst [vmem:[%s193 + $0x30] sm:$0xf] %v858
        %923 = vst [vmem:[%s193 + $0x34] sm:$0xf] %v859
        %924 = vst [vmem:[%s193 + $0x38] sm:$0xf] %v860
        %925 = vst [vmem:[%s193 + $0x3c] sm:$0xf] %v861
        %926 = vst [vmem:[%s193 + $0x40] sm:$0xf] %v862
        %927 = vst [vmem:[%s193 + $0x44] sm:$0xf] %v863
        %928 = vst [vmem:[%s193 + $0x48] sm:$0xf] %v864
        %929 = vst [vmem:[%s193 + $0x4c] sm:$0xf] %v865
        %930 = vst [vmem:[%s193 + $0x50] sm:$0xf] %v866
        %931 = vst [vmem:[%s193 + $0x54] sm:$0xf] %v867
        %932 = vst [vmem:[%s193 + $0x58] sm:$0xf] %v868
        %933 = vst [vmem:[%s193 + $0x5c] sm:$0xf] %v869
        %934 = vst [vmem:[%s193 + $0x60] sm:$0xf] %v870
        %935 = vst [vmem:[%s193 + $0x64] sm:$0xf] %v871
        %936 = vst [vmem:[%s193 + $0x68] sm:$0xf] %v872
        %937 = vst [vmem:[%s193 + $0x6c] sm:$0xf] %v873
        %938 = vst [vmem:[%s193 + $0x70] sm:$0xf] %v874
        %939 = vst [vmem:[%s193 + $0x74] sm:$0xf] %v875
        %940 = vst [vmem:[%s193 + $0x78] sm:$0xf] %v876
        %941 = vst [vmem:[%s193 + $0x7c] sm:$0xf] %v877
        %s942 = sand.u32 %s115, 1
        %s943 = scalar_lea.sflag [#allocation3], %s942
        %s944 = sand.u32 %s115, 1
        %s945 = smul.addr %s944, 128
        %s946 = scalar_lea.vmem [#allocation2], %s945
        // Predicated region
        $region37: #{tpu_custom_call.1} parent=35 // pred_check
          %p947 = pneg %p125
        $region38: #{tpu_custom_call.1} parent=35 // pred_check_branch
          %949 = sbr.rel (%p947) target = $region40
        $region39: #{tpu_custom_call.1} parent=35 // pred_region
          %s950 = smul.u32 32, %s18
          %s952 = ssub.s32 2048, 2048
          %953 = vsyncadd %s943, %s952
          %s954 = smul.addr %s950, 64
          %s955 = scalar_lea.hbm %s4, %s954
          %s956 = sshll.u32 %s946, 4
          %s957 = int_to_ptr.vmem [resolvable:$true] %s956
          %962 = dma.vmem_to_hbm [thread:$0]  %s957, 2048, %s955, %s943, 64, 64, 4
        $region40: #{tpu_custom_call.1} parent=35 // pred_fallthru
          _
      $region36: #{tpu_custom_call.1} parent=5 // pred_fallthru
        _
      %p963 = scmp.le.s32.totalorder 2, %s13
      // Predicated region
      $region41: #{tpu_custom_call.1} parent=5 // pred_check
        %p964 = pneg %p963
      $region42: #{tpu_custom_call.1} parent=5 // pred_check_branch
        %966 = sbr.rel (%p964) target = $region44
      $region43: #{tpu_custom_call.1} parent=5 // pred_region
        %s967 = ssub.s32 %s13, 2
        // Predicated region
        $region45: #{tpu_custom_call.1} parent=43 // pred_check
          %p968 = pneg %p131
        $region46: #{tpu_custom_call.1} parent=43 // pred_check_branch
          %970 = sbr.rel (%p968) target = $region48
        $region47: #{tpu_custom_call.1} parent=43 // pred_region
          %s971 = sand.u32 %s116, 1
          %s972 = scalar_lea.sflag [#allocation3], %s971
          %s973 = sand.u32 %s116, 1
          %s974 = smul.addr %s973, 128
          %s975 = scalar_lea.vmem [#allocation2], %s974
          %976 = dma.done %s972, 2048
        $region48: #{tpu_custom_call.1} parent=43 // pred_fallthru
          _
      $region44: #{tpu_custom_call.1} parent=5 // pred_fallthru
        _
    $region6: #{tpu_custom_call.1} parent=1 // loop_footer
      %s17 = sadd.s32 1, %s13
    $region7: #{tpu_custom_call.1} parent=1 // loop_footer_branch
      %12 = sbr.rel target = $region3
    $region8: #{tpu_custom_call.1} parent=1 // loop_exit
      _
    %977 = vsyncpa [#allocation3], 1
    %s978 = scalar_lea.sflag [#allocation3], 1
    %979 = vsyncpa %s978, 1

</llo_original>
